<compile_context>
chip_gen: v6e
topology: v6e:2x2x1
jax: 0.10.0
libtpu: 0.0.40
codegen_flags: <defaults>
</compile_context>

<pallas_src>
import functools

import jax
import jax.numpy as jnp
from jax import lax
from jax.experimental import pallas as pl
from jax.experimental.pallas import tpu as pltpu


def _round_up(x, m):
    return ((x + m - 1) // m) * m


def _label_smoothing_kernel(pred_ref, tgt_ref, w_ref, out_ref, *,
                            smoothing: float, n_rows: int, tm: int):
    """One row tile: per-row smoothed NLL written to out_ref (tm, 1)."""
    i = pl.program_id(0)

    x = pred_ref[...].astype(jnp.float32)                       # (tm, C)
    C = x.shape[-1]

    # log-softmax pieces without materializing the (tm, C) logp tile:
    #   -logp_j = logz - x_j,   logz = row_max + log(sum(exp(x - row_max)))
    m = jnp.max(x, axis=-1, keepdims=True)                      # (tm, 1)
    lse = jnp.log(jnp.sum(jnp.exp(x - m), axis=-1, keepdims=True))
    logz = m + lse                                              # (tm, 1)

    tgt = tgt_ref[...]                                          # (tm, 1) int32
    ignore = tgt == -100
    tgt_c = jnp.where(ignore, 0, tgt)                           # (tm, 1)

    class_idx = lax.broadcasted_iota(jnp.int32, x.shape, 1)     # (tm, C)
    x_tgt = jnp.sum(jnp.where(class_idx == tgt_c, x, 0.0),
                    axis=-1, keepdims=True)                     # (tm, 1)
    x_sum = jnp.sum(x, axis=-1, keepdims=True)                  # (tm, 1)

    eps = (smoothing / (C - 1)) if C > 1 else 0.0
    # onehot = eps everywhere, (1 - smoothing) at the target (scatter SETS):
    #   loss = eps * sum_j(-logp_j) + (1 - smoothing - eps) * (-logp_target)
    loss = (eps * (jnp.float32(C) * logz - x_sum)
            + (1.0 - smoothing - eps) * (logz - x_tgt))         # (tm, 1)

    loss = loss * w_ref[...].astype(jnp.float32)

    # Mask ignored rows and rows past N (the grid is cdiv-padded; padded rows
    # read unspecified data, so use `where` to zero them robustly).
    row = i * tm + lax.broadcasted_iota(jnp.int32, (tm, 1), 0)
    valid = jnp.logical_and(row < n_rows, jnp.logical_not(ignore))
    out_ref[...] = jnp.where(valid, loss, 0.0)


def label_smoothing_loss(pred, target, weight=None, *, smoothing=0.0, tm=1024):
    """pred: (N, C) float (any fp dtype); target: (N,) or (N,1) int;
    weight: optional (N,) float.  Returns the scalar mean loss."""
    N, C = pred.shape

    target = target.reshape(N, 1).astype(jnp.int32)
    if weight is None:
        weight = jnp.ones((N, 1), dtype=jnp.float32)
    else:
        weight = weight.reshape(N, 1).astype(jnp.float32)

    itemsize = jnp.dtype(pred.dtype).itemsize
    # Keep each pred tile within ~16 MiB so the double-buffered pipeline fits
    # comfortably even in v7x's 64 MiB VMEM (and far below v5e/v6e's 128 MiB).
    tile_budget = 16 * 1024 * 1024
    tm_cap = max(8, tile_budget // (C * itemsize))
    tm = min(int(tm), int(tm_cap), _round_up(N, 8))
    tm = max(8, (tm // 8) * 8)

    num_tiles = -(-N // tm)          # cdiv
    n_pad = num_tiles * tm

    kernel = functools.partial(_label_smoothing_kernel,
                               smoothing=float(smoothing), n_rows=N, tm=tm)

    cost = pl.CostEstimate(
        flops=6 * N * C,
        transcendentals=N * C,
        bytes_accessed=N * C * itemsize + 2 * N * 4 + n_pad * 4,
    )

    per_row = pl.pallas_call(
        kernel,
        out_shape=jax.ShapeDtypeStruct((n_pad, 1), jnp.float32),
        grid_spec=pltpu.PrefetchScalarGridSpec(
            num_scalar_prefetch=0,
            grid=(num_tiles,),
            in_specs=[
                pl.BlockSpec((tm, C), lambda i: (i, 0)),   # pred (native dtype)
                pl.BlockSpec((tm, 1), lambda i: (i, 0)),   # target
                pl.BlockSpec((tm, 1), lambda i: (i, 0)),   # weight
            ],
            out_specs=pl.BlockSpec((tm, 1), lambda i: (i, 0)),
        ),
        compiler_params=pltpu.CompilerParams(
            dimension_semantics=("parallel",),
            vmem_limit_bytes=48 * 1024 * 1024),
        cost_estimate=cost,
    )(pred, target, weight)

    # Mean over ALL rows (ignored rows still count in the denominator),
    # matching torch.mean in the reference module.
    return jnp.sum(per_row) / jnp.float32(N)


def _reference(pred, target, weight=None, smoothing=0.0):
    # Pure-JAX port of the PyTorch module for verification.
    target = target.reshape(-1, 1)
    logp = jax.nn.log_softmax(pred.astype(jnp.float32), axis=-1)
    C = pred.shape[-1]
    eps = (smoothing / (C - 1)) if C > 1 else 0.0
    mask = (target != -100).astype(jnp.float32)
    tgt = jnp.where(target == -100, 0, target)
    onehot = jnp.where(jnp.arange(C)[None, :] == tgt, 1.0 - smoothing, eps)
    loss = jnp.sum(-onehot * logp, axis=-1)
    loss = loss * mask.reshape(-1)
    if weight is not None:
        loss = loss * weight.reshape(-1)
    return jnp.mean(loss)


if __name__ == "__main__":
    key = jax.random.PRNGKey(0)
    k1, k2, k3 = jax.random.split(key, 3)

    smoothing = 0.1

    # Test 1: f32, weighted, N not divisible by 8 (exercises cdiv + masking).
    N, C = 20, 32
    pred = jax.random.normal(k1, (N, C), dtype=jnp.float32)
    target = jax.random.randint(k2, (N,), 0, C, dtype=jnp.int32)
    target = target.at[3].set(-100).at[10].set(-100)   # ignored rows
    weight = jax.random.uniform(k3, (N,), dtype=jnp.float32)

    out = jax.block_until_ready(
        label_smoothing_loss(pred, target, weight, smoothing=smoothing))
    ref = _reference(pred, target, weight, smoothing=smoothing)
    assert jnp.allclose(out, ref, rtol=1e-5, atol=1e-5), (out, ref)

    # Test 2: bf16 pred read natively (no wrapper cast), no weight, smoothing=0.
    pred_bf16 = pred[:16].astype(jnp.bfloat16)
    tgt2 = target[:16]
    out2 = jax.block_until_ready(
        label_smoothing_loss(pred_bf16, tgt2, None, smoothing=0.0))
    ref2 = _reference(pred_bf16.astype(jnp.float32), tgt2, None, smoothing=0.0)
    assert jnp.allclose(out2, ref2, rtol=1e-4, atol=1e-4), (out2, ref2)

    print("KERNEL_OK")
</pallas_src>

<mosaic_0001>
module attributes {stable_mosaic.version = 11 : i64} {
  func.func @_label_smoothing_kernel(%arg0: i32, %arg1: memref<24x32xf32, #tpu.memory_space<vmem>>, %arg2: memref<24x1xi32, #tpu.memory_space<vmem>>, %arg3: memref<24x1xf32, #tpu.memory_space<vmem>>, %arg4: memref<24x1xf32, #tpu.memory_space<vmem>>) attributes {dimension_semantics = [#tpu.dimension_semantics<parallel>], iteration_bounds = array<i64: 1>, scalar_prefetch = 0 : i64, scratch_operands = 0 : i64, tpu.core_type = #tpu.core_type<tc>, window_params = [{transform_indices = @transform_0, window_bounds = array<i64: 24, 32>}, {transform_indices = @transform_1, window_bounds = array<i64: 24, 1>}, {transform_indices = @transform_2, window_bounds = array<i64: 24, 1>}, {transform_indices = @transform_3, window_bounds = array<i64: 24, 1>}]} {
    %c0 = arith.constant 0 : index
    %c0_0 = arith.constant 0 : index
    %0 = vector.load %arg1[%c0, %c0_0] : memref<24x32xf32, #tpu.memory_space<vmem>>, vector<24x32xf32>
    %cst = arith.constant dense<0xFF800000> : vector<24xf32>
    %1 = vector.multi_reduction <maximumf>, %0, %cst [1] : vector<24x32xf32> to vector<24xf32>
    %2 = vector.shape_cast %1 : vector<24xf32> to vector<24x1xf32>
    %3 = vector.broadcast %2 : vector<24x1xf32> to vector<24x32xf32>
    %4 = arith.subf %0, %3 : vector<24x32xf32>
    %5 = math.exp %4 : vector<24x32xf32>
    %cst_1 = arith.constant dense<0.000000e+00> : vector<24xf32>
    %6 = vector.multi_reduction <add>, %5, %cst_1 [1] : vector<24x32xf32> to vector<24xf32>
    %7 = vector.shape_cast %6 : vector<24xf32> to vector<24x1xf32>
    %8 = math.log %7 : vector<24x1xf32>
    %9 = arith.addf %2, %8 : vector<24x1xf32>
    %c0_2 = arith.constant 0 : index
    %c0_3 = arith.constant 0 : index
    %10 = vector.load %arg2[%c0_2, %c0_3] : memref<24x1xi32, #tpu.memory_space<vmem>>, vector<24x1xi32>
    %c-100_i32 = arith.constant -100 : i32
    %11 = vector.broadcast %c-100_i32 : i32 to vector<24x1xi32>
    %12 = arith.cmpi eq, %10, %11 : vector<24x1xi32>
    %c0_i32 = arith.constant 0 : i32
    %13 = vector.broadcast %c0_i32 : i32 to vector<24x1xi32>
    %14 = arith.select %12, %13, %10 : vector<24x1xi1>, vector<24x1xi32>
    %15 = tpu.iota {dimensions = array<i32: 1>} : vector<24x32xi32>
    %16 = vector.broadcast %14 : vector<24x1xi32> to vector<24x32xi32>
    %17 = arith.cmpi eq, %15, %16 : vector<24x32xi32>
    %cst_4 = arith.constant 0.000000e+00 : f32
    %18 = vector.broadcast %cst_4 : f32 to vector<24x32xf32>
    %19 = arith.select %17, %0, %18 : vector<24x32xi1>, vector<24x32xf32>
    %cst_5 = arith.constant dense<0.000000e+00> : vector<24xf32>
    %20 = vector.multi_reduction <add>, %19, %cst_5 [1] : vector<24x32xf32> to vector<24xf32>
    %21 = vector.shape_cast %20 : vector<24xf32> to vector<24x1xf32>
    %cst_6 = arith.constant dense<0.000000e+00> : vector<24xf32>
    %22 = vector.multi_reduction <add>, %0, %cst_6 [1] : vector<24x32xf32> to vector<24xf32>
    %23 = vector.shape_cast %22 : vector<24xf32> to vector<24x1xf32>
    %cst_7 = arith.constant 3.200000e+01 : f32
    %24 = vector.broadcast %cst_7 : f32 to vector<24x1xf32>
    %25 = arith.mulf %24, %9 : vector<24x1xf32>
    %26 = arith.subf %25, %23 : vector<24x1xf32>
    %cst_8 = arith.constant 0.0032258064 : f32
    %27 = vector.broadcast %cst_8 : f32 to vector<24x1xf32>
    %28 = arith.mulf %27, %26 : vector<24x1xf32>
    %29 = arith.subf %9, %21 : vector<24x1xf32>
    %cst_9 = arith.constant 0.896774172 : f32
    %30 = vector.broadcast %cst_9 : f32 to vector<24x1xf32>
    %31 = arith.mulf %30, %29 : vector<24x1xf32>
    %32 = arith.addf %28, %31 : vector<24x1xf32>
    %c0_10 = arith.constant 0 : index
    %c0_11 = arith.constant 0 : index
    %33 = vector.load %arg3[%c0_10, %c0_11] : memref<24x1xf32, #tpu.memory_space<vmem>>, vector<24x1xf32>
    %34 = arith.mulf %32, %33 : vector<24x1xf32>
    %c24_i32 = arith.constant 24 : i32
    %35 = arith.muli %arg0, %c24_i32 : i32
    %36 = tpu.iota {dimensions = array<i32: 0>} : vector<24x1xi32>
    %37 = vector.broadcast %35 : i32 to vector<24x1xi32>
    %38 = arith.addi %37, %36 : vector<24x1xi32>
    %c20_i32 = arith.constant 20 : i32
    %39 = vector.broadcast %c20_i32 : i32 to vector<24x1xi32>
    %40 = arith.cmpi slt, %38, %39 : vector<24x1xi32>
    %cst_12 = arith.constant dense<true> : vector<24x1xi1>
    %41 = arith.xori %12, %cst_12 : vector<24x1xi1>
    %42 = arith.andi %40, %41 : vector<24x1xi1>
    %cst_13 = arith.constant 0.000000e+00 : f32
    %43 = vector.broadcast %cst_13 : f32 to vector<24x1xf32>
    %44 = arith.select %42, %34, %43 : vector<24x1xi1>, vector<24x1xf32>
    %c0_14 = arith.constant 0 : index
    %c0_15 = arith.constant 0 : index
    %45 = vector.load %arg4[%c0_14, %c0_15] : memref<24x1xf32, #tpu.memory_space<vmem>>, vector<24x1xf32>
    tpu.vector_store %arg4[%c0_14, %c0_15], %44 {strides = array<i32>} : memref<24x1xf32, #tpu.memory_space<vmem>>, vector<24x1xf32>,
    return
  }
  func.func @transform_0(%arg0: i32) -> (i32, i32) {
    %c0_i32 = arith.constant 0 : i32
    %c0_i32_0 = arith.constant 0 : i32
    return %arg0, %c0_i32 : i32, i32
  }
  func.func @transform_1(%arg0: i32) -> (i32, i32) {
    %c0_i32 = arith.constant 0 : i32
    %c0_i32_0 = arith.constant 0 : i32
    return %arg0, %c0_i32 : i32, i32
  }
  func.func @transform_2(%arg0: i32) -> (i32, i32) {
    %c0_i32 = arith.constant 0 : i32
    %c0_i32_0 = arith.constant 0 : i32
    return %arg0, %c0_i32 : i32, i32
  }
  func.func @transform_3(%arg0: i32) -> (i32, i32) {
    %c0_i32 = arith.constant 0 : i32
    %c0_i32_0 = arith.constant 0 : i32
    return %arg0, %c0_i32 : i32, i32
  }
}

</mosaic_0001>

<llo_original>
// kernel: tpu_custom_call.1
$region0: #{tpu_custom_call.1}
  #allocation0 [shape = 'u32[]', space=smem, size = 0x4, offset = 0x4, fixed_abs, tag = 'smem constant byte address 0x4 - core index']
  #allocation1 [shape = 'u32[144,128]{1,0:T(1,128)}', space=vmem, size = 0x12000, scoped, tag = 'internal scratch']
  %s0 = inlined_call_operand.vmem [shape: f32[20,32], index: 0, kind: input, shape index: {}]
  %s1 = inlined_call_operand.vmem [shape: s32[20,1], index: 1, kind: input, shape index: {}]
  %s2 = inlined_call_operand.vmem [shape: f32[20,1], index: 2, kind: input, shape index: {}]
  %s3 = inlined_call_operand.vmem [shape: f32[24,1], index: 3, kind: output, shape index: {}]
  %s4 = sld [smem:[#allocation0]]
  $region22: #{tpu_custom_call.1} parent=0
    _
  %s6 = ssub.s32 1, %s4
  %s7 = scalar_select 0, %s6, %s4
  // Predicated region
  $region2: #{tpu_custom_call.1} parent=0 // pred_check
    _
  $region3: #{tpu_custom_call.1} parent=0 // pred_check_branch
    %9 = sbr.rel (0) target = $region5
  $region4: #{tpu_custom_call.1} parent=0 // pred_region
    _
  $region5: #{tpu_custom_call.1} parent=0 // pred_fallthru
    _
  // Predicated region
  $region6: #{tpu_custom_call.1} parent=0 // pred_check
    _
  $region7: #{tpu_custom_call.1} parent=0 // pred_check_branch
    %11 = sbr.rel (0) target = $region9
  $region8: #{tpu_custom_call.1} parent=0 // pred_region
    _
  $region9: #{tpu_custom_call.1} parent=0 // pred_fallthru
    _
  // Predicated region
  $region10: #{tpu_custom_call.1} parent=0 // pred_check
    _
  $region11: #{tpu_custom_call.1} parent=0 // pred_check_branch
    %13 = sbr.rel (0) target = $region13
  $region12: #{tpu_custom_call.1} parent=0 // pred_region
    _
  $region13: #{tpu_custom_call.1} parent=0 // pred_fallthru
    _
  %v14 = vld [vmem:[%s0] sm:$0xff]
  %v15 = vld [vmem:[%s0 + $0x8] sm:$0xff]
  %v16 = vld [vmem:[%s0 + $0x10] sm:$0xff]
  %vm17 = vcmask 261120
  %v18 = vsel %vm17, %v14, -inf
  %19 = vmax.xlane.f32.xlu0 %v18
  %v20 = vpop.xlane.xlu0 %19
  %v21 = vsel %vm17, %v15, -inf
  %22 = vmax.xlane.f32.xlu0 %v21
  %v23 = vpop.xlane.xlu0 %22
  %v24 = vsel %vm17, %v16, -inf
  %25 = vmax.xlane.f32.xlu0 %v24
  %v26 = vpop.xlane.xlu0 %25
  %v27 = vsub.f32 %v14, %v20
  %v28 = vsub.f32 %v15, %v23
  %v29 = vsub.f32 %v16, %v26
  %v30 = vmul.f32 %v27, 1.442695
  %v31 = vpow.pop %v30
  %v32 = vmul.f32 %v28, 1.442695
  %v33 = vpow.pop %v32
  %v34 = vmul.f32 %v29, 1.442695
  %v35 = vpow.pop %v34
  %v36 = vsel %vm17, %v31, 0.0
  %37 = vadd.xlane.f32.xlu0 %v36
  %v38 = vpop.xlane.xlu0 %37
  %v39 = vsel %vm17, %v33, 0.0
  %40 = vadd.xlane.f32.xlu0 %v39
  %v41 = vpop.xlane.xlu0 %40
  %v42 = vsel %vm17, %v35, 0.0
  %43 = vadd.xlane.f32.xlu0 %v42
  %v44 = vpop.xlane.xlu0 %43
  %v45 = vlog2.pop %v38
  %v46 = vmul.f32 %v45, 0.6931472
  %v47 = vlog2.pop %v41
  %v48 = vmul.f32 %v47, 0.6931472
  %v49 = vlog2.pop %v44
  %v50 = vmul.f32 %v49, 0.6931472
  %v51 = vadd.f32 %v20, %v46
  %v52 = vadd.f32 %v23, %v48
  %v53 = vadd.f32 %v26, %v50
  %v54 = vld [vmem:[%s1] sm:$0xff]
  %v55 = vld [vmem:[%s1 + $0x8] sm:$0xff]
  %v56 = vld [vmem:[%s1 + $0x10] sm:$0xff]
  %vm57 = vcmp.eq.s32.totalorder %v54, 4294967196
  %vm58 = vcmp.eq.s32.totalorder %v55, 4294967196
  %vm59 = vcmp.eq.s32.totalorder %v56, 4294967196
  %v60 = vsel %vm57, 0, %v54
  %v61 = vsel %vm58, 0, %v55
  %v62 = vsel %vm59, 0, %v56
  %v63 = vlaneseq
  %v64 = vand.u32 %v63, 127
  %65 = vset.pattern.permute.xlu0 0
  %66 = vperm.xlu0 %65, %v60
  %v67 = vpop.permute.xlu0 %66
  %68 = vset.pattern.permute.xlu0 0
  %69 = vperm.xlu0 %68, %v61
  %v70 = vpop.permute.xlu0 %69
  %71 = vset.pattern.permute.xlu0 0
  %72 = vperm.xlu0 %71, %v62
  %v73 = vpop.permute.xlu0 %72
  %vm74 = vcmp.eq.s32.totalorder %v64, %v67
  %vm75 = vcmp.eq.s32.totalorder %v64, %v70
  %vm76 = vcmp.eq.s32.totalorder %v64, %v73
  %v77 = vsel %vm74, %v14, 0.0
  %v78 = vsel %vm75, %v15, 0.0
  %v79 = vsel %vm76, %v16, 0.0
  %v80 = vsel %vm17, %v77, 0.0
  %81 = vadd.xlane.f32.xlu0 %v80
  %v82 = vpop.xlane.xlu0 %81
  %v83 = vsel %vm17, %v78, 0.0
  %84 = vadd.xlane.f32.xlu0 %v83
  %v85 = vpop.xlane.xlu0 %84
  %v86 = vsel %vm17, %v79, 0.0
  %87 = vadd.xlane.f32.xlu0 %v86
  %v88 = vpop.xlane.xlu0 %87
  %v89 = vsel %vm17, %v14, 0.0
  %90 = vadd.xlane.f32.xlu0 %v89
  %v91 = vpop.xlane.xlu0 %90
  %v92 = vsel %vm17, %v15, 0.0
  %93 = vadd.xlane.f32.xlu0 %v92
  %v94 = vpop.xlane.xlu0 %93
  %v95 = vsel %vm17, %v16, 0.0
  %96 = vadd.xlane.f32.xlu0 %v95
  %v97 = vpop.xlane.xlu0 %96
  %v98 = vmul.f32 %v51, 32.0
  %v99 = vmul.f32 %v52, 32.0
  %v100 = vmul.f32 %v53, 32.0
  %v101 = vsub.f32 %v98, %v91
  %v102 = vsub.f32 %v99, %v94
  %v103 = vsub.f32 %v100, %v97
  %v104 = vmul.f32 %v101, 0.0032258064
  %v105 = vmul.f32 %v102, 0.0032258064
  %v106 = vmul.f32 %v103, 0.0032258064
  %v107 = vsub.f32 %v51, %v82
  %v108 = vsub.f32 %v52, %v85
  %v109 = vsub.f32 %v53, %v88
  %v110 = vmul.f32 %v107, 0.8967742
  %v111 = vmul.f32 %v108, 0.8967742
  %v112 = vmul.f32 %v109, 0.8967742
  %v113 = vadd.f32 %v104, %v110
  %v114 = vadd.f32 %v105, %v111
  %v115 = vadd.f32 %v106, %v112
  %v116 = vld [vmem:[%s2] sm:$0xff]
  %v117 = vld [vmem:[%s2 + $0x8] sm:$0xff]
  %v118 = vld [vmem:[%s2 + $0x10] sm:$0xff]
  %v119 = vmul.f32 %v113, %v116
  %v120 = vmul.f32 %v114, %v117
  %v121 = vmul.f32 %v115, %v118
  %s122 = smul.u32 0, 24
  %v123 = vlaneseq
  %v124 = vshrl.u32 %v123, 7
  %v125 = vadd.s32 %v124, 8
  %v126 = vadd.s32 %v124, 16
  %v127 = vstv %s122
  %v128 = vadd.s32 %v127, %v124
  %v129 = vadd.s32 %v127, %v125
  %v130 = vadd.s32 %v127, %v126
  %vm131 = vcmp.lt.s32.totalorder %v128, 20
  %vm132 = vcmp.lt.s32.totalorder %v129, 20
  %vm133 = vcmp.lt.s32.totalorder %v130, 20
  %vm134 = vmxor %vm57, 1
  %vm135 = vmxor %vm58, 1
  %vm136 = vmxor %vm59, 1
  %vm137 = vmand %vm131, %vm134
  %vm138 = vmand %vm132, %vm135
  %vm139 = vmand %vm133, %vm136
  %v140 = vsel %vm137, %v119, 0.0
  %v141 = vsel %vm138, %v120, 0.0
  %v142 = vsel %vm139, %v121, 0.0
  %vm143 = vcmask 7168
  %144 = vst.msk [vmem:[%s3] sm:$0xff] %vm143, %v140
  %145 = vst.msk [vmem:[%s3 + $0x8] sm:$0xff] %vm143, %v141
  %146 = vst.msk [vmem:[%s3 + $0x10] sm:$0xff] %vm143, %v142
  // Predicated region
  $region14: #{tpu_custom_call.1} parent=0 // pred_check
    _
  $region15: #{tpu_custom_call.1} parent=0 // pred_check_branch
    %148 = sbr.rel (0) target = $region17
  $region16: #{tpu_custom_call.1} parent=0 // pred_region
    _
  $region17: #{tpu_custom_call.1} parent=0 // pred_fallthru
    _
  // Predicated region
  $region18: #{tpu_custom_call.1} parent=0 // pred_check
    _
  $region19: #{tpu_custom_call.1} parent=0 // pred_check_branch
    %150 = sbr.rel (0) target = $region21
  $region20: #{tpu_custom_call.1} parent=0 // pred_region
    _
  $region21: #{tpu_custom_call.1} parent=0 // pred_fallthru
    _

</llo_original>
